<compile_context>
chip_gen: v7x
topology: tpu7x:2x2x1
jax: 0.10.0
libtpu: 0.0.40
codegen_flags: <defaults>
</compile_context>

<pallas_src>
import functools

import jax
import jax.numpy as jnp
from jax import lax
from jax.experimental import pallas as pl
from jax.experimental.pallas import tpu as pltpu

LANES = 128            # vreg lane width
CHUNK_ROWS = 32        # inner chunk: (32,128) f32 = 4 vregs/operand, stays in vregs
TARGET_TILE_ROWS = 512 # (512,128) f32 = 256 KiB/stream; 5 streams x 2 bufs ~ 2.5 MiB


def _cdiv(a, b):
    return -(-a // b)


def _round_up(a, b):
    return _cdiv(a, b) * b


def _newton_kernel(x0_ref, p_ref, out_ref, *, maxiter, ftol, xtol, n_chunks):
    """rtnobnd Newton loop for batched-scalar G(x) = a*x^3 + b*x - c.

    p_ref holds the packed parameters (3, tile_r, 128) = (a, b, c).
    Analytic Jacobian sharing x*x:  f = (a*x^2 + b)*x - c,  dfdx = 3*a*x^2 + b.
    Stateless per-lane gating: a lane keeps its x once |f| <= ftol,
    |step| <= xtol, or f is NaN (NaN mirrors the original loop's break).
    """

    def chunk_body(ci, carry):
        r0 = pl.multiple_of(ci * CHUNK_ROWS, CHUNK_ROWS)
        sl = pl.ds(r0, CHUNK_ROWS)
        a = p_ref[0, sl, :]
        b = p_ref[1, sl, :]
        c = p_ref[2, sl, :]
        x = x0_ref[sl, :]

        def newton(_, x):
            xx = x * x
            f = (a * xx + b) * x - c                    # forward residual
            dfdx = 3.0 * a * xx + b                     # dG/dx (> 0 for a,b > 0)
            # divide -> EUP reciprocal (own bundle slot); Newton self-corrects
            # the tiny approximation error.
            step = f * pl.reciprocal(dfdx, approx=True)
            halt = (jnp.isnan(f)
                    | (jnp.abs(f) <= ftol)
                    | (jnp.abs(step) <= xtol))
            return jnp.where(halt, x, x - step)

        x = lax.fori_loop(0, maxiter, newton, x, unroll=True)
        out_ref[sl, :] = x
        return carry

    lax.fori_loop(0, n_chunks, chunk_body, 0, unroll=False)


@functools.partial(jax.jit, static_argnames=("maxiter", "ftol", "xtol"))
def _solve(x0, a, b, c, maxiter, ftol, xtol):
    B = x0.shape[0]
    f32 = jnp.float32

    rows = _cdiv(B, LANES)
    # Tile sizing: big blocks to amortize grid-step overhead, but keep at
    # least 2 grid steps when the batch allows it (v7x 2-TC sharding), and
    # chunk-aligned so the in-kernel 32-row loop is uniform.
    if rows >= 2 * CHUNK_ROWS:
        tile_r = min(TARGET_TILE_ROWS, _round_up(_cdiv(rows, 2), CHUNK_ROWS))
    else:
        tile_r = _round_up(max(rows, 1), CHUNK_ROWS)
    rows_p = _round_up(rows, tile_r)
    Bp = rows_p * LANES

    def to2d(v, fill):
        v = v.astype(f32).reshape(-1)
        if Bp != B:  # pad only when needed; padding lanes solve x^3+x-1=0
            v = jnp.pad(v, (0, Bp - B), constant_values=fill)
        return v.reshape(rows_p, LANES)

    x2d = to2d(x0, 1.0)
    p3d = jnp.stack([to2d(a, 1.0), to2d(b, 1.0), to2d(c, 1.0)])  # (3,rows_p,128)

    kernel = functools.partial(_newton_kernel, maxiter=maxiter, ftol=ftol,
                               xtol=xtol, n_chunks=tile_r // CHUNK_ROWS)
    x_spec = pl.BlockSpec((tile_r, LANES), lambda i: (i, 0))
    p_spec = pl.BlockSpec((3, tile_r, LANES), lambda i: (0, i, 0))

    cost = pl.CostEstimate(
        flops=16 * maxiter * Bp,
        transcendentals=maxiter * Bp,
        bytes_accessed=5 * Bp * 4,
    )

    out2d = pl.pallas_call(
        kernel,
        out_shape=jax.ShapeDtypeStruct((rows_p, LANES), f32),
        grid=(rows_p // tile_r,),
        in_specs=[x_spec, p_spec],
        out_specs=x_spec,
        input_output_aliases={0: 0},               # reuse x0's buffer for the output
        compiler_params=pltpu.CompilerParams(
            dimension_semantics=("parallel",)),    # megacore-shard the batch axis
        cost_estimate=cost,
    )(x2d, p3d)

    return out2d.reshape(-1)[:B]


def tensor_newton(x0, a, b, c,
                  settings={'maxiter': 10, 'ftol': 1e-6, 'xtol': 1e-6,
                            'alpha': 0.75}):
    """JAX wrapper reproducing tensorNewton(G, mtd=0).forward(x0) for the
    elementwise batched-scalar residual G(x) = a*x^3 + b*x - c."""
    out = _solve(x0, a, b, c,
                 int(settings['maxiter']), float(settings['ftol']),
                 float(settings['xtol']))
    return out.astype(x0.dtype)


if __name__ == "__main__":
    key = jax.random.PRNGKey(0)
    k0, k1, k2, k3 = jax.random.split(key, 4)

    B = 200  # small batch of independent scalar root-finding problems
    x0 = jax.random.uniform(k0, (B,), jnp.float32, 0.5, 2.0)
    a = jax.random.uniform(k1, (B,), jnp.float32, 0.5, 1.5)
    b = jax.random.uniform(k2, (B,), jnp.float32, 0.1, 1.0)
    c = jax.random.uniform(k3, (B,), jnp.float32, 1.0, 5.0)

    x = jax.block_until_ready(tensor_newton(x0, a, b, c))

    # sanity: Newton should have driven the residual essentially to zero
    resid = jnp.max(jnp.abs(a * x ** 3 + b * x - c))
    assert bool(jnp.all(jnp.isfinite(x))), "non-finite solution"
    assert float(resid) < 1e-3, f"residual too large: {float(resid)}"
    print("KERNEL_OK")
</pallas_src>

<mosaic_0001>
module attributes {stable_mosaic.version = 11 : i64} {
  func.func @_newton_kernel(%arg0: i32, %arg1: memref<32x128xf32, #tpu.memory_space<vmem>>, %arg2: memref<3x32x128xf32, #tpu.memory_space<vmem>>, %arg3: memref<32x128xf32, #tpu.memory_space<vmem>>) attributes {dimension_semantics = [#tpu.dimension_semantics<parallel>], iteration_bounds = array<i64: 1>, scalar_prefetch = 0 : i64, scratch_operands = 0 : i64, tpu.core_type = #tpu.core_type<tc>, window_params = [{transform_indices = @transform_0, window_bounds = array<i64: 32, 128>}, {transform_indices = @transform_1, window_bounds = array<i64: 3, 32, 128>}, {transform_indices = @transform_2, window_bounds = array<i64: 32, 128>}]} {
    %c0_i32 = arith.constant 0 : i32
    %c32_i32 = arith.constant 32 : i32
    %0 = arith.muli %c0_i32, %c32_i32 : i32
    %1 = tpu.assume_multiple %0, 32 : i32
    %c0 = arith.constant 0 : index
    %2 = arith.index_cast %1 : i32 to index
    %c0_0 = arith.constant 0 : index
    %3 = vector.load %arg2[%c0, %2, %c0_0] : memref<3x32x128xf32, #tpu.memory_space<vmem>>, vector<1x32x128xf32>
    %4 = vector.shape_cast %3 : vector<1x32x128xf32> to vector<32x128xf32>
    %c1 = arith.constant 1 : index
    %5 = arith.index_cast %1 : i32 to index
    %c0_1 = arith.constant 0 : index
    %6 = vector.load %arg2[%c1, %5, %c0_1] : memref<3x32x128xf32, #tpu.memory_space<vmem>>, vector<1x32x128xf32>
    %7 = vector.shape_cast %6 : vector<1x32x128xf32> to vector<32x128xf32>
    %c2 = arith.constant 2 : index
    %8 = arith.index_cast %1 : i32 to index
    %c0_2 = arith.constant 0 : index
    %9 = vector.load %arg2[%c2, %8, %c0_2] : memref<3x32x128xf32, #tpu.memory_space<vmem>>, vector<1x32x128xf32>
    %10 = vector.shape_cast %9 : vector<1x32x128xf32> to vector<32x128xf32>
    %11 = arith.index_cast %1 : i32 to index
    %c0_3 = arith.constant 0 : index
    %12 = vector.load %arg1[%11, %c0_3] : memref<32x128xf32, #tpu.memory_space<vmem>>, vector<32x128xf32>
    %c0_i32_4 = arith.constant 0 : i32
    %13 = arith.mulf %12, %12 : vector<32x128xf32>
    %14 = arith.mulf %4, %13 : vector<32x128xf32>
    %15 = arith.addf %14, %7 : vector<32x128xf32>
    %16 = arith.mulf %15, %12 : vector<32x128xf32>
    %17 = arith.subf %16, %10 : vector<32x128xf32>
    %cst = arith.constant 3.000000e+00 : f32
    %18 = vector.broadcast %cst : f32 to vector<32x128xf32>
    %19 = arith.mulf %18, %4 : vector<32x128xf32>
    %20 = arith.mulf %19, %13 : vector<32x128xf32>
    %21 = arith.addf %20, %7 : vector<32x128xf32>
    %22 = tpu.reciprocal %21 {approx = true} : vector<32x128xf32> -> vector<32x128xf32>
    %23 = arith.mulf %17, %22 : vector<32x128xf32>
    %24 = arith.cmpf one, %17, %17 : vector<32x128xf32>
    %25 = math.absf %17 : vector<32x128xf32>
    %cst_5 = arith.constant 9.99999997E-7 : f32
    %26 = vector.broadcast %cst_5 : f32 to vector<32x128xf32>
    %27 = arith.cmpf ole, %25, %26 : vector<32x128xf32>
    %28 = arith.ori %24, %27 : vector<32x128xi1>
    %29 = math.absf %23 : vector<32x128xf32>
    %cst_6 = arith.constant 9.99999997E-7 : f32
    %30 = vector.broadcast %cst_6 : f32 to vector<32x128xf32>
    %31 = arith.cmpf ole, %29, %30 : vector<32x128xf32>
    %32 = arith.ori %28, %31 : vector<32x128xi1>
    %33 = arith.subf %12, %23 : vector<32x128xf32>
    %34 = arith.select %32, %12, %33 : vector<32x128xi1>, vector<32x128xf32>
    %c1_i32 = arith.constant 1 : i32
    %35 = arith.mulf %34, %34 : vector<32x128xf32>
    %36 = arith.mulf %4, %35 : vector<32x128xf32>
    %37 = arith.addf %36, %7 : vector<32x128xf32>
    %38 = arith.mulf %37, %34 : vector<32x128xf32>
    %39 = arith.subf %38, %10 : vector<32x128xf32>
    %cst_7 = arith.constant 3.000000e+00 : f32
    %40 = vector.broadcast %cst_7 : f32 to vector<32x128xf32>
    %41 = arith.mulf %40, %4 : vector<32x128xf32>
    %42 = arith.mulf %41, %35 : vector<32x128xf32>
    %43 = arith.addf %42, %7 : vector<32x128xf32>
    %44 = tpu.reciprocal %43 {approx = true} : vector<32x128xf32> -> vector<32x128xf32>
    %45 = arith.mulf %39, %44 : vector<32x128xf32>
    %46 = arith.cmpf one, %39, %39 : vector<32x128xf32>
    %47 = math.absf %39 : vector<32x128xf32>
    %cst_8 = arith.constant 9.99999997E-7 : f32
    %48 = vector.broadcast %cst_8 : f32 to vector<32x128xf32>
    %49 = arith.cmpf ole, %47, %48 : vector<32x128xf32>
    %50 = arith.ori %46, %49 : vector<32x128xi1>
    %51 = math.absf %45 : vector<32x128xf32>
    %cst_9 = arith.constant 9.99999997E-7 : f32
    %52 = vector.broadcast %cst_9 : f32 to vector<32x128xf32>
    %53 = arith.cmpf ole, %51, %52 : vector<32x128xf32>
    %54 = arith.ori %50, %53 : vector<32x128xi1>
    %55 = arith.subf %34, %45 : vector<32x128xf32>
    %56 = arith.select %54, %34, %55 : vector<32x128xi1>, vector<32x128xf32>
    %c2_i32 = arith.constant 2 : i32
    %57 = arith.mulf %56, %56 : vector<32x128xf32>
    %58 = arith.mulf %4, %57 : vector<32x128xf32>
    %59 = arith.addf %58, %7 : vector<32x128xf32>
    %60 = arith.mulf %59, %56 : vector<32x128xf32>
    %61 = arith.subf %60, %10 : vector<32x128xf32>
    %cst_10 = arith.constant 3.000000e+00 : f32
    %62 = vector.broadcast %cst_10 : f32 to vector<32x128xf32>
    %63 = arith.mulf %62, %4 : vector<32x128xf32>
    %64 = arith.mulf %63, %57 : vector<32x128xf32>
    %65 = arith.addf %64, %7 : vector<32x128xf32>
    %66 = tpu.reciprocal %65 {approx = true} : vector<32x128xf32> -> vector<32x128xf32>
    %67 = arith.mulf %61, %66 : vector<32x128xf32>
    %68 = arith.cmpf one, %61, %61 : vector<32x128xf32>
    %69 = math.absf %61 : vector<32x128xf32>
    %cst_11 = arith.constant 9.99999997E-7 : f32
    %70 = vector.broadcast %cst_11 : f32 to vector<32x128xf32>
    %71 = arith.cmpf ole, %69, %70 : vector<32x128xf32>
    %72 = arith.ori %68, %71 : vector<32x128xi1>
    %73 = math.absf %67 : vector<32x128xf32>
    %cst_12 = arith.constant 9.99999997E-7 : f32
    %74 = vector.broadcast %cst_12 : f32 to vector<32x128xf32>
    %75 = arith.cmpf ole, %73, %74 : vector<32x128xf32>
    %76 = arith.ori %72, %75 : vector<32x128xi1>
    %77 = arith.subf %56, %67 : vector<32x128xf32>
    %78 = arith.select %76, %56, %77 : vector<32x128xi1>, vector<32x128xf32>
    %c3_i32 = arith.constant 3 : i32
    %79 = arith.mulf %78, %78 : vector<32x128xf32>
    %80 = arith.mulf %4, %79 : vector<32x128xf32>
    %81 = arith.addf %80, %7 : vector<32x128xf32>
    %82 = arith.mulf %81, %78 : vector<32x128xf32>
    %83 = arith.subf %82, %10 : vector<32x128xf32>
    %cst_13 = arith.constant 3.000000e+00 : f32
    %84 = vector.broadcast %cst_13 : f32 to vector<32x128xf32>
    %85 = arith.mulf %84, %4 : vector<32x128xf32>
    %86 = arith.mulf %85, %79 : vector<32x128xf32>
    %87 = arith.addf %86, %7 : vector<32x128xf32>
    %88 = tpu.reciprocal %87 {approx = true} : vector<32x128xf32> -> vector<32x128xf32>
    %89 = arith.mulf %83, %88 : vector<32x128xf32>
    %90 = arith.cmpf one, %83, %83 : vector<32x128xf32>
    %91 = math.absf %83 : vector<32x128xf32>
    %cst_14 = arith.constant 9.99999997E-7 : f32
    %92 = vector.broadcast %cst_14 : f32 to vector<32x128xf32>
    %93 = arith.cmpf ole, %91, %92 : vector<32x128xf32>
    %94 = arith.ori %90, %93 : vector<32x128xi1>
    %95 = math.absf %89 : vector<32x128xf32>
    %cst_15 = arith.constant 9.99999997E-7 : f32
    %96 = vector.broadcast %cst_15 : f32 to vector<32x128xf32>
    %97 = arith.cmpf ole, %95, %96 : vector<32x128xf32>
    %98 = arith.ori %94, %97 : vector<32x128xi1>
    %99 = arith.subf %78, %89 : vector<32x128xf32>
    %100 = arith.select %98, %78, %99 : vector<32x128xi1>, vector<32x128xf32>
    %c4_i32 = arith.constant 4 : i32
    %101 = arith.mulf %100, %100 : vector<32x128xf32>
    %102 = arith.mulf %4, %101 : vector<32x128xf32>
    %103 = arith.addf %102, %7 : vector<32x128xf32>
    %104 = arith.mulf %103, %100 : vector<32x128xf32>
    %105 = arith.subf %104, %10 : vector<32x128xf32>
    %cst_16 = arith.constant 3.000000e+00 : f32
    %106 = vector.broadcast %cst_16 : f32 to vector<32x128xf32>
    %107 = arith.mulf %106, %4 : vector<32x128xf32>
    %108 = arith.mulf %107, %101 : vector<32x128xf32>
    %109 = arith.addf %108, %7 : vector<32x128xf32>
    %110 = tpu.reciprocal %109 {approx = true} : vector<32x128xf32> -> vector<32x128xf32>
    %111 = arith.mulf %105, %110 : vector<32x128xf32>
    %112 = arith.cmpf one, %105, %105 : vector<32x128xf32>
    %113 = math.absf %105 : vector<32x128xf32>
    %cst_17 = arith.constant 9.99999997E-7 : f32
    %114 = vector.broadcast %cst_17 : f32 to vector<32x128xf32>
    %115 = arith.cmpf ole, %113, %114 : vector<32x128xf32>
    %116 = arith.ori %112, %115 : vector<32x128xi1>
    %117 = math.absf %111 : vector<32x128xf32>
    %cst_18 = arith.constant 9.99999997E-7 : f32
    %118 = vector.broadcast %cst_18 : f32 to vector<32x128xf32>
    %119 = arith.cmpf ole, %117, %118 : vector<32x128xf32>
    %120 = arith.ori %116, %119 : vector<32x128xi1>
    %121 = arith.subf %100, %111 : vector<32x128xf32>
    %122 = arith.select %120, %100, %121 : vector<32x128xi1>, vector<32x128xf32>
    %c5_i32 = arith.constant 5 : i32
    %123 = arith.mulf %122, %122 : vector<32x128xf32>
    %124 = arith.mulf %4, %123 : vector<32x128xf32>
    %125 = arith.addf %124, %7 : vector<32x128xf32>
    %126 = arith.mulf %125, %122 : vector<32x128xf32>
    %127 = arith.subf %126, %10 : vector<32x128xf32>
    %cst_19 = arith.constant 3.000000e+00 : f32
    %128 = vector.broadcast %cst_19 : f32 to vector<32x128xf32>
    %129 = arith.mulf %128, %4 : vector<32x128xf32>
    %130 = arith.mulf %129, %123 : vector<32x128xf32>
    %131 = arith.addf %130, %7 : vector<32x128xf32>
    %132 = tpu.reciprocal %131 {approx = true} : vector<32x128xf32> -> vector<32x128xf32>
    %133 = arith.mulf %127, %132 : vector<32x128xf32>
    %134 = arith.cmpf one, %127, %127 : vector<32x128xf32>
    %135 = math.absf %127 : vector<32x128xf32>
    %cst_20 = arith.constant 9.99999997E-7 : f32
    %136 = vector.broadcast %cst_20 : f32 to vector<32x128xf32>
    %137 = arith.cmpf ole, %135, %136 : vector<32x128xf32>
    %138 = arith.ori %134, %137 : vector<32x128xi1>
    %139 = math.absf %133 : vector<32x128xf32>
    %cst_21 = arith.constant 9.99999997E-7 : f32
    %140 = vector.broadcast %cst_21 : f32 to vector<32x128xf32>
    %141 = arith.cmpf ole, %139, %140 : vector<32x128xf32>
    %142 = arith.ori %138, %141 : vector<32x128xi1>
    %143 = arith.subf %122, %133 : vector<32x128xf32>
    %144 = arith.select %142, %122, %143 : vector<32x128xi1>, vector<32x128xf32>
    %c6_i32 = arith.constant 6 : i32
    %145 = arith.mulf %144, %144 : vector<32x128xf32>
    %146 = arith.mulf %4, %145 : vector<32x128xf32>
    %147 = arith.addf %146, %7 : vector<32x128xf32>
    %148 = arith.mulf %147, %144 : vector<32x128xf32>
    %149 = arith.subf %148, %10 : vector<32x128xf32>
    %cst_22 = arith.constant 3.000000e+00 : f32
    %150 = vector.broadcast %cst_22 : f32 to vector<32x128xf32>
    %151 = arith.mulf %150, %4 : vector<32x128xf32>
    %152 = arith.mulf %151, %145 : vector<32x128xf32>
    %153 = arith.addf %152, %7 : vector<32x128xf32>
    %154 = tpu.reciprocal %153 {approx = true} : vector<32x128xf32> -> vector<32x128xf32>
    %155 = arith.mulf %149, %154 : vector<32x128xf32>
    %156 = arith.cmpf one, %149, %149 : vector<32x128xf32>
    %157 = math.absf %149 : vector<32x128xf32>
    %cst_23 = arith.constant 9.99999997E-7 : f32
    %158 = vector.broadcast %cst_23 : f32 to vector<32x128xf32>
    %159 = arith.cmpf ole, %157, %158 : vector<32x128xf32>
    %160 = arith.ori %156, %159 : vector<32x128xi1>
    %161 = math.absf %155 : vector<32x128xf32>
    %cst_24 = arith.constant 9.99999997E-7 : f32
    %162 = vector.broadcast %cst_24 : f32 to vector<32x128xf32>
    %163 = arith.cmpf ole, %161, %162 : vector<32x128xf32>
    %164 = arith.ori %160, %163 : vector<32x128xi1>
    %165 = arith.subf %144, %155 : vector<32x128xf32>
    %166 = arith.select %164, %144, %165 : vector<32x128xi1>, vector<32x128xf32>
    %c7_i32 = arith.constant 7 : i32
    %167 = arith.mulf %166, %166 : vector<32x128xf32>
    %168 = arith.mulf %4, %167 : vector<32x128xf32>
    %169 = arith.addf %168, %7 : vector<32x128xf32>
    %170 = arith.mulf %169, %166 : vector<32x128xf32>
    %171 = arith.subf %170, %10 : vector<32x128xf32>
    %cst_25 = arith.constant 3.000000e+00 : f32
    %172 = vector.broadcast %cst_25 : f32 to vector<32x128xf32>
    %173 = arith.mulf %172, %4 : vector<32x128xf32>
    %174 = arith.mulf %173, %167 : vector<32x128xf32>
    %175 = arith.addf %174, %7 : vector<32x128xf32>
    %176 = tpu.reciprocal %175 {approx = true} : vector<32x128xf32> -> vector<32x128xf32>
    %177 = arith.mulf %171, %176 : vector<32x128xf32>
    %178 = arith.cmpf one, %171, %171 : vector<32x128xf32>
    %179 = math.absf %171 : vector<32x128xf32>
    %cst_26 = arith.constant 9.99999997E-7 : f32
    %180 = vector.broadcast %cst_26 : f32 to vector<32x128xf32>
    %181 = arith.cmpf ole, %179, %180 : vector<32x128xf32>
    %182 = arith.ori %178, %181 : vector<32x128xi1>
    %183 = math.absf %177 : vector<32x128xf32>
    %cst_27 = arith.constant 9.99999997E-7 : f32
    %184 = vector.broadcast %cst_27 : f32 to vector<32x128xf32>
    %185 = arith.cmpf ole, %183, %184 : vector<32x128xf32>
    %186 = arith.ori %182, %185 : vector<32x128xi1>
    %187 = arith.subf %166, %177 : vector<32x128xf32>
    %188 = arith.select %186, %166, %187 : vector<32x128xi1>, vector<32x128xf32>
    %c8_i32 = arith.constant 8 : i32
    %189 = arith.mulf %188, %188 : vector<32x128xf32>
    %190 = arith.mulf %4, %189 : vector<32x128xf32>
    %191 = arith.addf %190, %7 : vector<32x128xf32>
    %192 = arith.mulf %191, %188 : vector<32x128xf32>
    %193 = arith.subf %192, %10 : vector<32x128xf32>
    %cst_28 = arith.constant 3.000000e+00 : f32
    %194 = vector.broadcast %cst_28 : f32 to vector<32x128xf32>
    %195 = arith.mulf %194, %4 : vector<32x128xf32>
    %196 = arith.mulf %195, %189 : vector<32x128xf32>
    %197 = arith.addf %196, %7 : vector<32x128xf32>
    %198 = tpu.reciprocal %197 {approx = true} : vector<32x128xf32> -> vector<32x128xf32>
    %199 = arith.mulf %193, %198 : vector<32x128xf32>
    %200 = arith.cmpf one, %193, %193 : vector<32x128xf32>
    %201 = math.absf %193 : vector<32x128xf32>
    %cst_29 = arith.constant 9.99999997E-7 : f32
    %202 = vector.broadcast %cst_29 : f32 to vector<32x128xf32>
    %203 = arith.cmpf ole, %201, %202 : vector<32x128xf32>
    %204 = arith.ori %200, %203 : vector<32x128xi1>
    %205 = math.absf %199 : vector<32x128xf32>
    %cst_30 = arith.constant 9.99999997E-7 : f32
    %206 = vector.broadcast %cst_30 : f32 to vector<32x128xf32>
    %207 = arith.cmpf ole, %205, %206 : vector<32x128xf32>
    %208 = arith.ori %204, %207 : vector<32x128xi1>
    %209 = arith.subf %188, %199 : vector<32x128xf32>
    %210 = arith.select %208, %188, %209 : vector<32x128xi1>, vector<32x128xf32>
    %c9_i32 = arith.constant 9 : i32
    %211 = arith.mulf %210, %210 : vector<32x128xf32>
    %212 = arith.mulf %4, %211 : vector<32x128xf32>
    %213 = arith.addf %212, %7 : vector<32x128xf32>
    %214 = arith.mulf %213, %210 : vector<32x128xf32>
    %215 = arith.subf %214, %10 : vector<32x128xf32>
    %cst_31 = arith.constant 3.000000e+00 : f32
    %216 = vector.broadcast %cst_31 : f32 to vector<32x128xf32>
    %217 = arith.mulf %216, %4 : vector<32x128xf32>
    %218 = arith.mulf %217, %211 : vector<32x128xf32>
    %219 = arith.addf %218, %7 : vector<32x128xf32>
    %220 = tpu.reciprocal %219 {approx = true} : vector<32x128xf32> -> vector<32x128xf32>
    %221 = arith.mulf %215, %220 : vector<32x128xf32>
    %222 = arith.cmpf one, %215, %215 : vector<32x128xf32>
    %223 = math.absf %215 : vector<32x128xf32>
    %cst_32 = arith.constant 9.99999997E-7 : f32
    %224 = vector.broadcast %cst_32 : f32 to vector<32x128xf32>
    %225 = arith.cmpf ole, %223, %224 : vector<32x128xf32>
    %226 = arith.ori %222, %225 : vector<32x128xi1>
    %227 = math.absf %221 : vector<32x128xf32>
    %cst_33 = arith.constant 9.99999997E-7 : f32
    %228 = vector.broadcast %cst_33 : f32 to vector<32x128xf32>
    %229 = arith.cmpf ole, %227, %228 : vector<32x128xf32>
    %230 = arith.ori %226, %229 : vector<32x128xi1>
    %231 = arith.subf %210, %221 : vector<32x128xf32>
    %232 = arith.select %230, %210, %231 : vector<32x128xi1>, vector<32x128xf32>
    %233 = arith.index_cast %1 : i32 to index
    %c0_34 = arith.constant 0 : index
    %234 = vector.load %arg3[%233, %c0_34] : memref<32x128xf32, #tpu.memory_space<vmem>>, vector<32x128xf32>
    tpu.vector_store %arg3[%233, %c0_34], %232 {strides = array<i32>} : memref<32x128xf32, #tpu.memory_space<vmem>>, vector<32x128xf32>,
    %c1_i32_35 = arith.constant 1 : i32
    return
  }
  func.func @transform_0(%arg0: i32) -> (i32, i32) {
    %c0_i32 = arith.constant 0 : i32
    %c0_i32_0 = arith.constant 0 : i32
    return %arg0, %c0_i32 : i32, i32
  }
  func.func @transform_1(%arg0: i32) -> (i32, i32, i32) {
    %c0_i32 = arith.constant 0 : i32
    %c0_i32_0 = arith.constant 0 : i32
    %c0_i32_1 = arith.constant 0 : i32
    return %c0_i32, %arg0, %c0_i32_0 : i32, i32, i32
  }
  func.func @transform_2(%arg0: i32) -> (i32, i32) {
    %c0_i32 = arith.constant 0 : i32
    %c0_i32_0 = arith.constant 0 : i32
    return %arg0, %c0_i32 : i32, i32
  }
}

</mosaic_0001>

<llo_original>
// kernel: _solve.1
$region0: #{_solve.1}
  #allocation0 [shape = 'u32[]', space=smem, size = 0x4, offset = 0x4, fixed_abs, tag = 'smem constant byte address 0x4 - core index']
  #allocation1 [shape = 'u32[144,128]{1,0:T(1,128)}', space=vmem, size = 0x12000, scoped, tag = 'internal scratch']
  %s0 = inlined_call_operand.vmem [shape: f32[32,128], index: 0, kind: input, shape index: {}, may-alias: {0,2}]
  %s1 = inlined_call_operand.vmem [shape: f32[3,32,128], index: 1, kind: input, shape index: {}]
  %s2 = inlined_call_operand.vmem [shape: f32[32,128], index: 2, kind: output, shape index: {}, may-alias: {0,2}]
  %s3 = sld [smem:[#allocation0]]
  $region18: #{_solve.1} parent=0
    _
  %s5 = ssub.s32 1, %s3
  %s6 = scalar_select 0, %s5, %s3
  // Predicated region
  $region2: #{_solve.1} parent=0 // pred_check
    _
  $region3: #{_solve.1} parent=0 // pred_check_branch
    %8 = sbr.rel (0) target = $region5
  $region4: #{_solve.1} parent=0 // pred_region
    _
  $region5: #{_solve.1} parent=0 // pred_fallthru
    _
  // Predicated region
  $region6: #{_solve.1} parent=0 // pred_check
    _
  $region7: #{_solve.1} parent=0 // pred_check_branch
    %10 = sbr.rel (0) target = $region9
  $region8: #{_solve.1} parent=0 // pred_region
    _
  $region9: #{_solve.1} parent=0 // pred_fallthru
    _
  %v11 = vld [vmem:[%s1] sm:$0xff]
  %v12 = vld [vmem:[%s1 + $0x8] sm:$0xff]
  %v13 = vld [vmem:[%s1 + $0x10] sm:$0xff]
  %v14 = vld [vmem:[%s1 + $0x18] sm:$0xff]
  %s15 = sadd.s32 0, 32
  %s16 = scalar_lea.vmem %s1, %s15
  %v17 = vld [vmem:[%s16] sm:$0xff]
  %v18 = vld [vmem:[%s16 + $0x8] sm:$0xff]
  %v19 = vld [vmem:[%s16 + $0x10] sm:$0xff]
  %v20 = vld [vmem:[%s16 + $0x18] sm:$0xff]
  %s21 = sadd.s32 0, 64
  %s22 = scalar_lea.vmem %s1, %s21
  %v23 = vld [vmem:[%s22] sm:$0xff]
  %v24 = vld [vmem:[%s22 + $0x8] sm:$0xff]
  %v25 = vld [vmem:[%s22 + $0x10] sm:$0xff]
  %v26 = vld [vmem:[%s22 + $0x18] sm:$0xff]
  %v27 = vld [vmem:[%s0] sm:$0xff]
  %v28 = vld [vmem:[%s0 + $0x8] sm:$0xff]
  %v29 = vld [vmem:[%s0 + $0x10] sm:$0xff]
  %v30 = vld [vmem:[%s0 + $0x18] sm:$0xff]
  %v31 = vmul.f32 %v27, %v27
  %v32 = vmul.f32 %v28, %v28
  %v33 = vmul.f32 %v29, %v29
  %v34 = vmul.f32 %v30, %v30
  %v35 = vmul.f32 %v11, %v31
  %v36 = vmul.f32 %v12, %v32
  %v37 = vmul.f32 %v13, %v33
  %v38 = vmul.f32 %v14, %v34
  %v39 = vadd.f32 %v35, %v17
  %v40 = vadd.f32 %v36, %v18
  %v41 = vadd.f32 %v37, %v19
  %v42 = vadd.f32 %v38, %v20
  %v43 = vmul.f32 %v39, %v27
  %v44 = vmul.f32 %v40, %v28
  %v45 = vmul.f32 %v41, %v29
  %v46 = vmul.f32 %v42, %v30
  %v47 = vsub.f32 %v43, %v23
  %v48 = vsub.f32 %v44, %v24
  %v49 = vsub.f32 %v45, %v25
  %v50 = vsub.f32 %v46, %v26
  %v51 = vmul.f32 %v11, 3.0
  %v52 = vmul.f32 %v12, 3.0
  %v53 = vmul.f32 %v13, 3.0
  %v54 = vmul.f32 %v14, 3.0
  %v55 = vmul.f32 %v51, %v31
  %v56 = vmul.f32 %v52, %v32
  %v57 = vmul.f32 %v53, %v33
  %v58 = vmul.f32 %v54, %v34
  %v59 = vadd.f32 %v55, %v17
  %v60 = vadd.f32 %v56, %v18
  %v61 = vadd.f32 %v57, %v19
  %v62 = vadd.f32 %v58, %v20
  %v63 = vrcp.pop %v59
  %v64 = vrcp.pop %v60
  %v65 = vrcp.pop %v61
  %v66 = vrcp.pop %v62
  %v67 = vmul.f32 %v47, %v63
  %v68 = vmul.f32 %v48, %v64
  %v69 = vmul.f32 %v49, %v65
  %v70 = vmul.f32 %v50, %v66
  %vm71 = vcmp.ne.f32.partialorder %v47, %v47
  %vm72 = vcmp.ne.f32.partialorder %v48, %v48
  %vm73 = vcmp.ne.f32.partialorder %v49, %v49
  %vm74 = vcmp.ne.f32.partialorder %v50, %v50
  %v75 = vand.u32 2147483647, %v47
  %v76 = vand.u32 2147483647, %v48
  %v77 = vand.u32 2147483647, %v49
  %v78 = vand.u32 2147483647, %v50
  %vm79 = vcmp.le.f32.partialorder %v75, 1e-06
  %vm80 = vcmp.le.f32.partialorder %v76, 1e-06
  %vm81 = vcmp.le.f32.partialorder %v77, 1e-06
  %vm82 = vcmp.le.f32.partialorder %v78, 1e-06
  %vm83 = vmor %vm71, %vm79
  %vm84 = vmor %vm72, %vm80
  %vm85 = vmor %vm73, %vm81
  %vm86 = vmor %vm74, %vm82
  %v87 = vand.u32 2147483647, %v67
  %v88 = vand.u32 2147483647, %v68
  %v89 = vand.u32 2147483647, %v69
  %v90 = vand.u32 2147483647, %v70
  %vm91 = vcmp.le.f32.partialorder %v87, 1e-06
  %vm92 = vcmp.le.f32.partialorder %v88, 1e-06
  %vm93 = vcmp.le.f32.partialorder %v89, 1e-06
  %vm94 = vcmp.le.f32.partialorder %v90, 1e-06
  %vm95 = vmor %vm83, %vm91
  %vm96 = vmor %vm84, %vm92
  %vm97 = vmor %vm85, %vm93
  %vm98 = vmor %vm86, %vm94
  %v99 = vsub.f32 %v27, %v67
  %v100 = vsub.f32 %v28, %v68
  %v101 = vsub.f32 %v29, %v69
  %v102 = vsub.f32 %v30, %v70
  %v103 = vsel %vm95, %v27, %v99
  %v104 = vsel %vm96, %v28, %v100
  %v105 = vsel %vm97, %v29, %v101
  %v106 = vsel %vm98, %v30, %v102
  %v107 = vmul.f32 %v103, %v103
  %v108 = vmul.f32 %v104, %v104
  %v109 = vmul.f32 %v105, %v105
  %v110 = vmul.f32 %v106, %v106
  %v111 = vmul.f32 %v11, %v107
  %v112 = vmul.f32 %v12, %v108
  %v113 = vmul.f32 %v13, %v109
  %v114 = vmul.f32 %v14, %v110
  %v115 = vadd.f32 %v111, %v17
  %v116 = vadd.f32 %v112, %v18
  %v117 = vadd.f32 %v113, %v19
  %v118 = vadd.f32 %v114, %v20
  %v119 = vmul.f32 %v115, %v103
  %v120 = vmul.f32 %v116, %v104
  %v121 = vmul.f32 %v117, %v105
  %v122 = vmul.f32 %v118, %v106
  %v123 = vsub.f32 %v119, %v23
  %v124 = vsub.f32 %v120, %v24
  %v125 = vsub.f32 %v121, %v25
  %v126 = vsub.f32 %v122, %v26
  %v127 = vmul.f32 %v51, %v107
  %v128 = vmul.f32 %v52, %v108
  %v129 = vmul.f32 %v53, %v109
  %v130 = vmul.f32 %v54, %v110
  %v131 = vadd.f32 %v127, %v17
  %v132 = vadd.f32 %v128, %v18
  %v133 = vadd.f32 %v129, %v19
  %v134 = vadd.f32 %v130, %v20
  %v135 = vrcp.pop %v131
  %v136 = vrcp.pop %v132
  %v137 = vrcp.pop %v133
  %v138 = vrcp.pop %v134
  %v139 = vmul.f32 %v123, %v135
  %v140 = vmul.f32 %v124, %v136
  %v141 = vmul.f32 %v125, %v137
  %v142 = vmul.f32 %v126, %v138
  %vm143 = vcmp.ne.f32.partialorder %v123, %v123
  %vm144 = vcmp.ne.f32.partialorder %v124, %v124
  %vm145 = vcmp.ne.f32.partialorder %v125, %v125
  %vm146 = vcmp.ne.f32.partialorder %v126, %v126
  %v147 = vand.u32 2147483647, %v123
  %v148 = vand.u32 2147483647, %v124
  %v149 = vand.u32 2147483647, %v125
  %v150 = vand.u32 2147483647, %v126
  %vm151 = vcmp.le.f32.partialorder %v147, 1e-06
  %vm152 = vcmp.le.f32.partialorder %v148, 1e-06
  %vm153 = vcmp.le.f32.partialorder %v149, 1e-06
  %vm154 = vcmp.le.f32.partialorder %v150, 1e-06
  %vm155 = vmor %vm143, %vm151
  %vm156 = vmor %vm144, %vm152
  %vm157 = vmor %vm145, %vm153
  %vm158 = vmor %vm146, %vm154
  %v159 = vand.u32 2147483647, %v139
  %v160 = vand.u32 2147483647, %v140
  %v161 = vand.u32 2147483647, %v141
  %v162 = vand.u32 2147483647, %v142
  %vm163 = vcmp.le.f32.partialorder %v159, 1e-06
  %vm164 = vcmp.le.f32.partialorder %v160, 1e-06
  %vm165 = vcmp.le.f32.partialorder %v161, 1e-06
  %vm166 = vcmp.le.f32.partialorder %v162, 1e-06
  %vm167 = vmor %vm155, %vm163
  %vm168 = vmor %vm156, %vm164
  %vm169 = vmor %vm157, %vm165
  %vm170 = vmor %vm158, %vm166
  %v171 = vsub.f32 %v103, %v139
  %v172 = vsub.f32 %v104, %v140
  %v173 = vsub.f32 %v105, %v141
  %v174 = vsub.f32 %v106, %v142
  %v175 = vsel %vm167, %v103, %v171
  %v176 = vsel %vm168, %v104, %v172
  %v177 = vsel %vm169, %v105, %v173
  %v178 = vsel %vm170, %v106, %v174
  %v179 = vmul.f32 %v175, %v175
  %v180 = vmul.f32 %v176, %v176
  %v181 = vmul.f32 %v177, %v177
  %v182 = vmul.f32 %v178, %v178
  %v183 = vmul.f32 %v11, %v179
  %v184 = vmul.f32 %v12, %v180
  %v185 = vmul.f32 %v13, %v181
  %v186 = vmul.f32 %v14, %v182
  %v187 = vadd.f32 %v183, %v17
  %v188 = vadd.f32 %v184, %v18
  %v189 = vadd.f32 %v185, %v19
  %v190 = vadd.f32 %v186, %v20
  %v191 = vmul.f32 %v187, %v175
  %v192 = vmul.f32 %v188, %v176
  %v193 = vmul.f32 %v189, %v177
  %v194 = vmul.f32 %v190, %v178
  %v195 = vsub.f32 %v191, %v23
  %v196 = vsub.f32 %v192, %v24
  %v197 = vsub.f32 %v193, %v25
  %v198 = vsub.f32 %v194, %v26
  %v199 = vmul.f32 %v51, %v179
  %v200 = vmul.f32 %v52, %v180
  %v201 = vmul.f32 %v53, %v181
  %v202 = vmul.f32 %v54, %v182
  %v203 = vadd.f32 %v199, %v17
  %v204 = vadd.f32 %v200, %v18
  %v205 = vadd.f32 %v201, %v19
  %v206 = vadd.f32 %v202, %v20
  %v207 = vrcp.pop %v203
  %v208 = vrcp.pop %v204
  %v209 = vrcp.pop %v205
  %v210 = vrcp.pop %v206
  %v211 = vmul.f32 %v195, %v207
  %v212 = vmul.f32 %v196, %v208
  %v213 = vmul.f32 %v197, %v209
  %v214 = vmul.f32 %v198, %v210
  %vm215 = vcmp.ne.f32.partialorder %v195, %v195
  %vm216 = vcmp.ne.f32.partialorder %v196, %v196
  %vm217 = vcmp.ne.f32.partialorder %v197, %v197
  %vm218 = vcmp.ne.f32.partialorder %v198, %v198
  %v219 = vand.u32 2147483647, %v195
  %v220 = vand.u32 2147483647, %v196
  %v221 = vand.u32 2147483647, %v197
  %v222 = vand.u32 2147483647, %v198
  %vm223 = vcmp.le.f32.partialorder %v219, 1e-06
  %vm224 = vcmp.le.f32.partialorder %v220, 1e-06
  %vm225 = vcmp.le.f32.partialorder %v221, 1e-06
  %vm226 = vcmp.le.f32.partialorder %v222, 1e-06
  %vm227 = vmor %vm215, %vm223
  %vm228 = vmor %vm216, %vm224
  %vm229 = vmor %vm217, %vm225
  %vm230 = vmor %vm218, %vm226
  %v231 = vand.u32 2147483647, %v211
  %v232 = vand.u32 2147483647, %v212
  %v233 = vand.u32 2147483647, %v213
  %v234 = vand.u32 2147483647, %v214
  %vm235 = vcmp.le.f32.partialorder %v231, 1e-06
  %vm236 = vcmp.le.f32.partialorder %v232, 1e-06
  %vm237 = vcmp.le.f32.partialorder %v233, 1e-06
  %vm238 = vcmp.le.f32.partialorder %v234, 1e-06
  %vm239 = vmor %vm227, %vm235
  %vm240 = vmor %vm228, %vm236
  %vm241 = vmor %vm229, %vm237
  %vm242 = vmor %vm230, %vm238
  %v243 = vsub.f32 %v175, %v211
  %v244 = vsub.f32 %v176, %v212
  %v245 = vsub.f32 %v177, %v213
  %v246 = vsub.f32 %v178, %v214
  %v247 = vsel %vm239, %v175, %v243
  %v248 = vsel %vm240, %v176, %v244
  %v249 = vsel %vm241, %v177, %v245
  %v250 = vsel %vm242, %v178, %v246
  %v251 = vmul.f32 %v247, %v247
  %v252 = vmul.f32 %v248, %v248
  %v253 = vmul.f32 %v249, %v249
  %v254 = vmul.f32 %v250, %v250
  %v255 = vmul.f32 %v11, %v251
  %v256 = vmul.f32 %v12, %v252
  %v257 = vmul.f32 %v13, %v253
  %v258 = vmul.f32 %v14, %v254
  %v259 = vadd.f32 %v255, %v17
  %v260 = vadd.f32 %v256, %v18
  %v261 = vadd.f32 %v257, %v19
  %v262 = vadd.f32 %v258, %v20
  %v263 = vmul.f32 %v259, %v247
  %v264 = vmul.f32 %v260, %v248
  %v265 = vmul.f32 %v261, %v249
  %v266 = vmul.f32 %v262, %v250
  %v267 = vsub.f32 %v263, %v23
  %v268 = vsub.f32 %v264, %v24
  %v269 = vsub.f32 %v265, %v25
  %v270 = vsub.f32 %v266, %v26
  %v271 = vmul.f32 %v51, %v251
  %v272 = vmul.f32 %v52, %v252
  %v273 = vmul.f32 %v53, %v253
  %v274 = vmul.f32 %v54, %v254
  %v275 = vadd.f32 %v271, %v17
  %v276 = vadd.f32 %v272, %v18
  %v277 = vadd.f32 %v273, %v19
  %v278 = vadd.f32 %v274, %v20
  %v279 = vrcp.pop %v275
  %v280 = vrcp.pop %v276
  %v281 = vrcp.pop %v277
  %v282 = vrcp.pop %v278
  %v283 = vmul.f32 %v267, %v279
  %v284 = vmul.f32 %v268, %v280
  %v285 = vmul.f32 %v269, %v281
  %v286 = vmul.f32 %v270, %v282
  %vm287 = vcmp.ne.f32.partialorder %v267, %v267
  %vm288 = vcmp.ne.f32.partialorder %v268, %v268
  %vm289 = vcmp.ne.f32.partialorder %v269, %v269
  %vm290 = vcmp.ne.f32.partialorder %v270, %v270
  %v291 = vand.u32 2147483647, %v267
  %v292 = vand.u32 2147483647, %v268
  %v293 = vand.u32 2147483647, %v269
  %v294 = vand.u32 2147483647, %v270
  %vm295 = vcmp.le.f32.partialorder %v291, 1e-06
  %vm296 = vcmp.le.f32.partialorder %v292, 1e-06
  %vm297 = vcmp.le.f32.partialorder %v293, 1e-06
  %vm298 = vcmp.le.f32.partialorder %v294, 1e-06
  %vm299 = vmor %vm287, %vm295
  %vm300 = vmor %vm288, %vm296
  %vm301 = vmor %vm289, %vm297
  %vm302 = vmor %vm290, %vm298
  %v303 = vand.u32 2147483647, %v283
  %v304 = vand.u32 2147483647, %v284
  %v305 = vand.u32 2147483647, %v285
  %v306 = vand.u32 2147483647, %v286
  %vm307 = vcmp.le.f32.partialorder %v303, 1e-06
  %vm308 = vcmp.le.f32.partialorder %v304, 1e-06
  %vm309 = vcmp.le.f32.partialorder %v305, 1e-06
  %vm310 = vcmp.le.f32.partialorder %v306, 1e-06
  %vm311 = vmor %vm299, %vm307
  %vm312 = vmor %vm300, %vm308
  %vm313 = vmor %vm301, %vm309
  %vm314 = vmor %vm302, %vm310
  %v315 = vsub.f32 %v247, %v283
  %v316 = vsub.f32 %v248, %v284
  %v317 = vsub.f32 %v249, %v285
  %v318 = vsub.f32 %v250, %v286
  %v319 = vsel %vm311, %v247, %v315
  %v320 = vsel %vm312, %v248, %v316
  %v321 = vsel %vm313, %v249, %v317
  %v322 = vsel %vm314, %v250, %v318
  %v323 = vmul.f32 %v319, %v319
  %v324 = vmul.f32 %v320, %v320
  %v325 = vmul.f32 %v321, %v321
  %v326 = vmul.f32 %v322, %v322
  %v327 = vmul.f32 %v11, %v323
  %v328 = vmul.f32 %v12, %v324
  %v329 = vmul.f32 %v13, %v325
  %v330 = vmul.f32 %v14, %v326
  %v331 = vadd.f32 %v327, %v17
  %v332 = vadd.f32 %v328, %v18
  %v333 = vadd.f32 %v329, %v19
  %v334 = vadd.f32 %v330, %v20
  %v335 = vmul.f32 %v331, %v319
  %v336 = vmul.f32 %v332, %v320
  %v337 = vmul.f32 %v333, %v321
  %v338 = vmul.f32 %v334, %v322
  %v339 = vsub.f32 %v335, %v23
  %v340 = vsub.f32 %v336, %v24
  %v341 = vsub.f32 %v337, %v25
  %v342 = vsub.f32 %v338, %v26
  %v343 = vmul.f32 %v51, %v323
  %v344 = vmul.f32 %v52, %v324
  %v345 = vmul.f32 %v53, %v325
  %v346 = vmul.f32 %v54, %v326
  %v347 = vadd.f32 %v343, %v17
  %v348 = vadd.f32 %v344, %v18
  %v349 = vadd.f32 %v345, %v19
  %v350 = vadd.f32 %v346, %v20
  %v351 = vrcp.pop %v347
  %v352 = vrcp.pop %v348
  %v353 = vrcp.pop %v349
  %v354 = vrcp.pop %v350
  %v355 = vmul.f32 %v339, %v351
  %v356 = vmul.f32 %v340, %v352
  %v357 = vmul.f32 %v341, %v353
  %v358 = vmul.f32 %v342, %v354
  %vm359 = vcmp.ne.f32.partialorder %v339, %v339
  %vm360 = vcmp.ne.f32.partialorder %v340, %v340
  %vm361 = vcmp.ne.f32.partialorder %v341, %v341
  %vm362 = vcmp.ne.f32.partialorder %v342, %v342
  %v363 = vand.u32 2147483647, %v339
  %v364 = vand.u32 2147483647, %v340
  %v365 = vand.u32 2147483647, %v341
  %v366 = vand.u32 2147483647, %v342
  %vm367 = vcmp.le.f32.partialorder %v363, 1e-06
  %vm368 = vcmp.le.f32.partialorder %v364, 1e-06
  %vm369 = vcmp.le.f32.partialorder %v365, 1e-06
  %vm370 = vcmp.le.f32.partialorder %v366, 1e-06
  %vm371 = vmor %vm359, %vm367
  %vm372 = vmor %vm360, %vm368
  %vm373 = vmor %vm361, %vm369
  %vm374 = vmor %vm362, %vm370
  %v375 = vand.u32 2147483647, %v355
  %v376 = vand.u32 2147483647, %v356
  %v377 = vand.u32 2147483647, %v357
  %v378 = vand.u32 2147483647, %v358
  %vm379 = vcmp.le.f32.partialorder %v375, 1e-06
  %vm380 = vcmp.le.f32.partialorder %v376, 1e-06
  %vm381 = vcmp.le.f32.partialorder %v377, 1e-06
  %vm382 = vcmp.le.f32.partialorder %v378, 1e-06
  %vm383 = vmor %vm371, %vm379
  %vm384 = vmor %vm372, %vm380
  %vm385 = vmor %vm373, %vm381
  %vm386 = vmor %vm374, %vm382
  %v387 = vsub.f32 %v319, %v355
  %v388 = vsub.f32 %v320, %v356
  %v389 = vsub.f32 %v321, %v357
  %v390 = vsub.f32 %v322, %v358
  %v391 = vsel %vm383, %v319, %v387
  %v392 = vsel %vm384, %v320, %v388
  %v393 = vsel %vm385, %v321, %v389
  %v394 = vsel %vm386, %v322, %v390
  %v395 = vmul.f32 %v391, %v391
  %v396 = vmul.f32 %v392, %v392
  %v397 = vmul.f32 %v393, %v393
  %v398 = vmul.f32 %v394, %v394
  %v399 = vmul.f32 %v11, %v395
  %v400 = vmul.f32 %v12, %v396
  %v401 = vmul.f32 %v13, %v397
  %v402 = vmul.f32 %v14, %v398
  %v403 = vadd.f32 %v399, %v17
  %v404 = vadd.f32 %v400, %v18
  %v405 = vadd.f32 %v401, %v19
  %v406 = vadd.f32 %v402, %v20
  %v407 = vmul.f32 %v403, %v391
  %v408 = vmul.f32 %v404, %v392
  %v409 = vmul.f32 %v405, %v393
  %v410 = vmul.f32 %v406, %v394
  %v411 = vsub.f32 %v407, %v23
  %v412 = vsub.f32 %v408, %v24
  %v413 = vsub.f32 %v409, %v25
  %v414 = vsub.f32 %v410, %v26
  %v415 = vmul.f32 %v51, %v395
  %v416 = vmul.f32 %v52, %v396
  %v417 = vmul.f32 %v53, %v397
  %v418 = vmul.f32 %v54, %v398
  %v419 = vadd.f32 %v415, %v17
  %v420 = vadd.f32 %v416, %v18
  %v421 = vadd.f32 %v417, %v19
  %v422 = vadd.f32 %v418, %v20
  %v423 = vrcp.pop %v419
  %v424 = vrcp.pop %v420
  %v425 = vrcp.pop %v421
  %v426 = vrcp.pop %v422
  %v427 = vmul.f32 %v411, %v423
  %v428 = vmul.f32 %v412, %v424
  %v429 = vmul.f32 %v413, %v425
  %v430 = vmul.f32 %v414, %v426
  %vm431 = vcmp.ne.f32.partialorder %v411, %v411
  %vm432 = vcmp.ne.f32.partialorder %v412, %v412
  %vm433 = vcmp.ne.f32.partialorder %v413, %v413
  %vm434 = vcmp.ne.f32.partialorder %v414, %v414
  %v435 = vand.u32 2147483647, %v411
  %v436 = vand.u32 2147483647, %v412
  %v437 = vand.u32 2147483647, %v413
  %v438 = vand.u32 2147483647, %v414
  %vm439 = vcmp.le.f32.partialorder %v435, 1e-06
  %vm440 = vcmp.le.f32.partialorder %v436, 1e-06
  %vm441 = vcmp.le.f32.partialorder %v437, 1e-06
  %vm442 = vcmp.le.f32.partialorder %v438, 1e-06
  %vm443 = vmor %vm431, %vm439
  %vm444 = vmor %vm432, %vm440
  %vm445 = vmor %vm433, %vm441
  %vm446 = vmor %vm434, %vm442
  %v447 = vand.u32 2147483647, %v427
  %v448 = vand.u32 2147483647, %v428
  %v449 = vand.u32 2147483647, %v429
  %v450 = vand.u32 2147483647, %v430
  %vm451 = vcmp.le.f32.partialorder %v447, 1e-06
  %vm452 = vcmp.le.f32.partialorder %v448, 1e-06
  %vm453 = vcmp.le.f32.partialorder %v449, 1e-06
  %vm454 = vcmp.le.f32.partialorder %v450, 1e-06
  %vm455 = vmor %vm443, %vm451
  %vm456 = vmor %vm444, %vm452
  %vm457 = vmor %vm445, %vm453
  %vm458 = vmor %vm446, %vm454
  %v459 = vsub.f32 %v391, %v427
  %v460 = vsub.f32 %v392, %v428
  %v461 = vsub.f32 %v393, %v429
  %v462 = vsub.f32 %v394, %v430
  %v463 = vsel %vm455, %v391, %v459
  %v464 = vsel %vm456, %v392, %v460
  %v465 = vsel %vm457, %v393, %v461
  %v466 = vsel %vm458, %v394, %v462
  %v467 = vmul.f32 %v463, %v463
  %v468 = vmul.f32 %v464, %v464
  %v469 = vmul.f32 %v465, %v465
  %v470 = vmul.f32 %v466, %v466
  %v471 = vmul.f32 %v11, %v467
  %v472 = vmul.f32 %v12, %v468
  %v473 = vmul.f32 %v13, %v469
  %v474 = vmul.f32 %v14, %v470
  %v475 = vadd.f32 %v471, %v17
  %v476 = vadd.f32 %v472, %v18
  %v477 = vadd.f32 %v473, %v19
  %v478 = vadd.f32 %v474, %v20
  %v479 = vmul.f32 %v475, %v463
  %v480 = vmul.f32 %v476, %v464
  %v481 = vmul.f32 %v477, %v465
  %v482 = vmul.f32 %v478, %v466
  %v483 = vsub.f32 %v479, %v23
  %v484 = vsub.f32 %v480, %v24
  %v485 = vsub.f32 %v481, %v25
  %v486 = vsub.f32 %v482, %v26
  %v487 = vmul.f32 %v51, %v467
  %v488 = vmul.f32 %v52, %v468
  %v489 = vmul.f32 %v53, %v469
  %v490 = vmul.f32 %v54, %v470
  %v491 = vadd.f32 %v487, %v17
  %v492 = vadd.f32 %v488, %v18
  %v493 = vadd.f32 %v489, %v19
  %v494 = vadd.f32 %v490, %v20
  %v495 = vrcp.pop %v491
  %v496 = vrcp.pop %v492
  %v497 = vrcp.pop %v493
  %v498 = vrcp.pop %v494
  %v499 = vmul.f32 %v483, %v495
  %v500 = vmul.f32 %v484, %v496
  %v501 = vmul.f32 %v485, %v497
  %v502 = vmul.f32 %v486, %v498
  %vm503 = vcmp.ne.f32.partialorder %v483, %v483
  %vm504 = vcmp.ne.f32.partialorder %v484, %v484
  %vm505 = vcmp.ne.f32.partialorder %v485, %v485
  %vm506 = vcmp.ne.f32.partialorder %v486, %v486
  %v507 = vand.u32 2147483647, %v483
  %v508 = vand.u32 2147483647, %v484
  %v509 = vand.u32 2147483647, %v485
  %v510 = vand.u32 2147483647, %v486
  %vm511 = vcmp.le.f32.partialorder %v507, 1e-06
  %vm512 = vcmp.le.f32.partialorder %v508, 1e-06
  %vm513 = vcmp.le.f32.partialorder %v509, 1e-06
  %vm514 = vcmp.le.f32.partialorder %v510, 1e-06
  %vm515 = vmor %vm503, %vm511
  %vm516 = vmor %vm504, %vm512
  %vm517 = vmor %vm505, %vm513
  %vm518 = vmor %vm506, %vm514
  %v519 = vand.u32 2147483647, %v499
  %v520 = vand.u32 2147483647, %v500
  %v521 = vand.u32 2147483647, %v501
  %v522 = vand.u32 2147483647, %v502
  %vm523 = vcmp.le.f32.partialorder %v519, 1e-06
  %vm524 = vcmp.le.f32.partialorder %v520, 1e-06
  %vm525 = vcmp.le.f32.partialorder %v521, 1e-06
  %vm526 = vcmp.le.f32.partialorder %v522, 1e-06
  %vm527 = vmor %vm515, %vm523
  %vm528 = vmor %vm516, %vm524
  %vm529 = vmor %vm517, %vm525
  %vm530 = vmor %vm518, %vm526
  %v531 = vsub.f32 %v463, %v499
  %v532 = vsub.f32 %v464, %v500
  %v533 = vsub.f32 %v465, %v501
  %v534 = vsub.f32 %v466, %v502
  %v535 = vsel %vm527, %v463, %v531
  %v536 = vsel %vm528, %v464, %v532
  %v537 = vsel %vm529, %v465, %v533
  %v538 = vsel %vm530, %v466, %v534
  %v539 = vmul.f32 %v535, %v535
  %v540 = vmul.f32 %v536, %v536
  %v541 = vmul.f32 %v537, %v537
  %v542 = vmul.f32 %v538, %v538
  %v543 = vmul.f32 %v11, %v539
  %v544 = vmul.f32 %v12, %v540
  %v545 = vmul.f32 %v13, %v541
  %v546 = vmul.f32 %v14, %v542
  %v547 = vadd.f32 %v543, %v17
  %v548 = vadd.f32 %v544, %v18
  %v549 = vadd.f32 %v545, %v19
  %v550 = vadd.f32 %v546, %v20
  %v551 = vmul.f32 %v547, %v535
  %v552 = vmul.f32 %v548, %v536
  %v553 = vmul.f32 %v549, %v537
  %v554 = vmul.f32 %v550, %v538
  %v555 = vsub.f32 %v551, %v23
  %v556 = vsub.f32 %v552, %v24
  %v557 = vsub.f32 %v553, %v25
  %v558 = vsub.f32 %v554, %v26
  %v559 = vmul.f32 %v51, %v539
  %v560 = vmul.f32 %v52, %v540
  %v561 = vmul.f32 %v53, %v541
  %v562 = vmul.f32 %v54, %v542
  %v563 = vadd.f32 %v559, %v17
  %v564 = vadd.f32 %v560, %v18
  %v565 = vadd.f32 %v561, %v19
  %v566 = vadd.f32 %v562, %v20
  %v567 = vrcp.pop %v563
  %v568 = vrcp.pop %v564
  %v569 = vrcp.pop %v565
  %v570 = vrcp.pop %v566
  %v571 = vmul.f32 %v555, %v567
  %v572 = vmul.f32 %v556, %v568
  %v573 = vmul.f32 %v557, %v569
  %v574 = vmul.f32 %v558, %v570
  %vm575 = vcmp.ne.f32.partialorder %v555, %v555
  %vm576 = vcmp.ne.f32.partialorder %v556, %v556
  %vm577 = vcmp.ne.f32.partialorder %v557, %v557
  %vm578 = vcmp.ne.f32.partialorder %v558, %v558
  %v579 = vand.u32 2147483647, %v555
  %v580 = vand.u32 2147483647, %v556
  %v581 = vand.u32 2147483647, %v557
  %v582 = vand.u32 2147483647, %v558
  %vm583 = vcmp.le.f32.partialorder %v579, 1e-06
  %vm584 = vcmp.le.f32.partialorder %v580, 1e-06
  %vm585 = vcmp.le.f32.partialorder %v581, 1e-06
  %vm586 = vcmp.le.f32.partialorder %v582, 1e-06
  %vm587 = vmor %vm575, %vm583
  %vm588 = vmor %vm576, %vm584
  %vm589 = vmor %vm577, %vm585
  %vm590 = vmor %vm578, %vm586
  %v591 = vand.u32 2147483647, %v571
  %v592 = vand.u32 2147483647, %v572
  %v593 = vand.u32 2147483647, %v573
  %v594 = vand.u32 2147483647, %v574
  %vm595 = vcmp.le.f32.partialorder %v591, 1e-06
  %vm596 = vcmp.le.f32.partialorder %v592, 1e-06
  %vm597 = vcmp.le.f32.partialorder %v593, 1e-06
  %vm598 = vcmp.le.f32.partialorder %v594, 1e-06
  %vm599 = vmor %vm587, %vm595
  %vm600 = vmor %vm588, %vm596
  %vm601 = vmor %vm589, %vm597
  %vm602 = vmor %vm590, %vm598
  %v603 = vsub.f32 %v535, %v571
  %v604 = vsub.f32 %v536, %v572
  %v605 = vsub.f32 %v537, %v573
  %v606 = vsub.f32 %v538, %v574
  %v607 = vsel %vm599, %v535, %v603
  %v608 = vsel %vm600, %v536, %v604
  %v609 = vsel %vm601, %v537, %v605
  %v610 = vsel %vm602, %v538, %v606
  %v611 = vmul.f32 %v607, %v607
  %v612 = vmul.f32 %v608, %v608
  %v613 = vmul.f32 %v609, %v609
  %v614 = vmul.f32 %v610, %v610
  %v615 = vmul.f32 %v11, %v611
  %v616 = vmul.f32 %v12, %v612
  %v617 = vmul.f32 %v13, %v613
  %v618 = vmul.f32 %v14, %v614
  %v619 = vadd.f32 %v615, %v17
  %v620 = vadd.f32 %v616, %v18
  %v621 = vadd.f32 %v617, %v19
  %v622 = vadd.f32 %v618, %v20
  %v623 = vmul.f32 %v619, %v607
  %v624 = vmul.f32 %v620, %v608
  %v625 = vmul.f32 %v621, %v609
  %v626 = vmul.f32 %v622, %v610
  %v627 = vsub.f32 %v623, %v23
  %v628 = vsub.f32 %v624, %v24
  %v629 = vsub.f32 %v625, %v25
  %v630 = vsub.f32 %v626, %v26
  %v631 = vmul.f32 %v51, %v611
  %v632 = vmul.f32 %v52, %v612
  %v633 = vmul.f32 %v53, %v613
  %v634 = vmul.f32 %v54, %v614
  %v635 = vadd.f32 %v631, %v17
  %v636 = vadd.f32 %v632, %v18
  %v637 = vadd.f32 %v633, %v19
  %v638 = vadd.f32 %v634, %v20
  %v639 = vrcp.pop %v635
  %v640 = vrcp.pop %v636
  %v641 = vrcp.pop %v637
  %v642 = vrcp.pop %v638
  %v643 = vmul.f32 %v627, %v639
  %v644 = vmul.f32 %v628, %v640
  %v645 = vmul.f32 %v629, %v641
  %v646 = vmul.f32 %v630, %v642
  %vm647 = vcmp.ne.f32.partialorder %v627, %v627
  %vm648 = vcmp.ne.f32.partialorder %v628, %v628
  %vm649 = vcmp.ne.f32.partialorder %v629, %v629
  %vm650 = vcmp.ne.f32.partialorder %v630, %v630
  %v651 = vand.u32 2147483647, %v627
  %v652 = vand.u32 2147483647, %v628
  %v653 = vand.u32 2147483647, %v629
  %v654 = vand.u32 2147483647, %v630
  %vm655 = vcmp.le.f32.partialorder %v651, 1e-06
  %vm656 = vcmp.le.f32.partialorder %v652, 1e-06
  %vm657 = vcmp.le.f32.partialorder %v653, 1e-06
  %vm658 = vcmp.le.f32.partialorder %v654, 1e-06
  %vm659 = vmor %vm647, %vm655
  %vm660 = vmor %vm648, %vm656
  %vm661 = vmor %vm649, %vm657
  %vm662 = vmor %vm650, %vm658
  %v663 = vand.u32 2147483647, %v643
  %v664 = vand.u32 2147483647, %v644
  %v665 = vand.u32 2147483647, %v645
  %v666 = vand.u32 2147483647, %v646
  %vm667 = vcmp.le.f32.partialorder %v663, 1e-06
  %vm668 = vcmp.le.f32.partialorder %v664, 1e-06
  %vm669 = vcmp.le.f32.partialorder %v665, 1e-06
  %vm670 = vcmp.le.f32.partialorder %v666, 1e-06
  %vm671 = vmor %vm659, %vm667
  %vm672 = vmor %vm660, %vm668
  %vm673 = vmor %vm661, %vm669
  %vm674 = vmor %vm662, %vm670
  %v675 = vsub.f32 %v607, %v643
  %v676 = vsub.f32 %v608, %v644
  %v677 = vsub.f32 %v609, %v645
  %v678 = vsub.f32 %v610, %v646
  %v679 = vsel %vm671, %v607, %v675
  %v680 = vsel %vm672, %v608, %v676
  %v681 = vsel %vm673, %v609, %v677
  %v682 = vsel %vm674, %v610, %v678
  %v683 = vmul.f32 %v679, %v679
  %v684 = vmul.f32 %v680, %v680
  %v685 = vmul.f32 %v681, %v681
  %v686 = vmul.f32 %v682, %v682
  %v687 = vmul.f32 %v11, %v683
  %v688 = vmul.f32 %v12, %v684
  %v689 = vmul.f32 %v13, %v685
  %v690 = vmul.f32 %v14, %v686
  %v691 = vadd.f32 %v687, %v17
  %v692 = vadd.f32 %v688, %v18
  %v693 = vadd.f32 %v689, %v19
  %v694 = vadd.f32 %v690, %v20
  %v695 = vmul.f32 %v691, %v679
  %v696 = vmul.f32 %v692, %v680
  %v697 = vmul.f32 %v693, %v681
  %v698 = vmul.f32 %v694, %v682
  %v699 = vsub.f32 %v695, %v23
  %v700 = vsub.f32 %v696, %v24
  %v701 = vsub.f32 %v697, %v25
  %v702 = vsub.f32 %v698, %v26
  %v703 = vmul.f32 %v51, %v683
  %v704 = vmul.f32 %v52, %v684
  %v705 = vmul.f32 %v53, %v685
  %v706 = vmul.f32 %v54, %v686
  %v707 = vadd.f32 %v703, %v17
  %v708 = vadd.f32 %v704, %v18
  %v709 = vadd.f32 %v705, %v19
  %v710 = vadd.f32 %v706, %v20
  %v711 = vrcp.pop %v707
  %v712 = vrcp.pop %v708
  %v713 = vrcp.pop %v709
  %v714 = vrcp.pop %v710
  %v715 = vmul.f32 %v699, %v711
  %v716 = vmul.f32 %v700, %v712
  %v717 = vmul.f32 %v701, %v713
  %v718 = vmul.f32 %v702, %v714
  %vm719 = vcmp.ne.f32.partialorder %v699, %v699
  %vm720 = vcmp.ne.f32.partialorder %v700, %v700
  %vm721 = vcmp.ne.f32.partialorder %v701, %v701
  %vm722 = vcmp.ne.f32.partialorder %v702, %v702
  %v723 = vand.u32 2147483647, %v699
  %v724 = vand.u32 2147483647, %v700
  %v725 = vand.u32 2147483647, %v701
  %v726 = vand.u32 2147483647, %v702
  %vm727 = vcmp.le.f32.partialorder %v723, 1e-06
  %vm728 = vcmp.le.f32.partialorder %v724, 1e-06
  %vm729 = vcmp.le.f32.partialorder %v725, 1e-06
  %vm730 = vcmp.le.f32.partialorder %v726, 1e-06
  %vm731 = vmor %vm719, %vm727
  %vm732 = vmor %vm720, %vm728
  %vm733 = vmor %vm721, %vm729
  %vm734 = vmor %vm722, %vm730
  %v735 = vand.u32 2147483647, %v715
  %v736 = vand.u32 2147483647, %v716
  %v737 = vand.u32 2147483647, %v717
  %v738 = vand.u32 2147483647, %v718
  %vm739 = vcmp.le.f32.partialorder %v735, 1e-06
  %vm740 = vcmp.le.f32.partialorder %v736, 1e-06
  %vm741 = vcmp.le.f32.partialorder %v737, 1e-06
  %vm742 = vcmp.le.f32.partialorder %v738, 1e-06
  %vm743 = vmor %vm731, %vm739
  %vm744 = vmor %vm732, %vm740
  %vm745 = vmor %vm733, %vm741
  %vm746 = vmor %vm734, %vm742
  %v747 = vsub.f32 %v679, %v715
  %v748 = vsub.f32 %v680, %v716
  %v749 = vsub.f32 %v681, %v717
  %v750 = vsub.f32 %v682, %v718
  %v751 = vsel %vm743, %v679, %v747
  %v752 = vsel %vm744, %v680, %v748
  %v753 = vsel %vm745, %v681, %v749
  %v754 = vsel %vm746, %v682, %v750
  %755 = vst [vmem:[%s2] sm:$0xff] %v751
  %756 = vst [vmem:[%s2 + $0x8] sm:$0xff] %v752
  %757 = vst [vmem:[%s2 + $0x10] sm:$0xff] %v753
  %758 = vst [vmem:[%s2 + $0x18] sm:$0xff] %v754
  // Predicated region
  $region10: #{_solve.1} parent=0 // pred_check
    _
  $region11: #{_solve.1} parent=0 // pred_check_branch
    %760 = sbr.rel (0) target = $region13
  $region12: #{_solve.1} parent=0 // pred_region
    _
  $region13: #{_solve.1} parent=0 // pred_fallthru
    _
  // Predicated region
  $region14: #{_solve.1} parent=0 // pred_check
    _
  $region15: #{_solve.1} parent=0 // pred_check_branch
    %762 = sbr.rel (0) target = $region17
  $region16: #{_solve.1} parent=0 // pred_region
    _
  $region17: #{_solve.1} parent=0 // pred_fallthru
    _

</llo_original>
